<compile_context>
chip_gen: v5e
topology: v5e:2x2
jax: 0.10.0
libtpu: 0.0.40
codegen_flags: <defaults>
</compile_context>

<pallas_src>
import functools

import jax
import jax.numpy as jnp
from jax.experimental import pallas as pl
from jax.experimental.pallas import tpu as pltpu


def _round_up(x, m):
    return (x + m - 1) // m * m


def _ltc_kernel(xh_ref, w_ref, b_ref, tau_ref, h_ref, out_ref, acc_ref):
    """Computes one (bm, bn) output tile; K (= I+H) is the last grid axis."""
    k = pl.program_id(2)

    @pl.when(k == 0)
    def _init():
        acc_ref[...] = jnp.zeros_like(acc_ref)

    # Fused [x | h_prev] @ [W_ih^T ; W_hh^T] partial product, f32 MXU accumulation.
    acc_ref[...] += jnp.dot(
        xh_ref[...], w_ref[...], preferred_element_type=jnp.float32
    )

    @pl.when(k == pl.num_programs(2) - 1)
    def _finalize():
        rnn_out = jnp.tanh(acc_ref[...] + b_ref[...])
        # approx=True would use the cheap EUP reciprocal (~2^-12 accuracy); kept exact
        # to match the PyTorch f32 reference.
        inv_tau = pl.reciprocal(jnp.abs(tau_ref[...]))
        h_prev = h_ref[...].astype(jnp.float32)
        h_new = h_prev + inv_tau * (rnn_out - h_prev)
        out_ref[...] = h_new.astype(out_ref.dtype)


def liquid_time_constant_forward(
    x, h_prev, w_ih, w_hh, b_ih, b_hh, tau,
    *, compute_dtype=None, bm=None, bn=None, bk=None,
):
    """LTC forward.

    x: (B, I), h_prev: (B, H), w_ih: (H, I), w_hh: (H, H), b_ih/b_hh/tau: (H,).
    compute_dtype: dtype for the MXU matmul operands (e.g. jnp.bfloat16); accumulation,
      tanh and the tau blend are always f32 and the hidden state keeps h_prev.dtype.
    bm/bn/bk: optional tile-size overrides (rounded up to hardware tiling).
    """
    B, I = x.shape
    Bh, H = h_prev.shape
    assert Bh == B
    K = I + H

    f32 = jnp.float32
    if compute_dtype is None:
        compute_dtype = x.dtype
    compute_dtype = jnp.dtype(compute_dtype)
    out_dtype = h_prev.dtype

    # --- tile sizes -----------------------------------------------------------
    sub = max(8, 32 // compute_dtype.itemsize)            # sublane pack: 8 f32, 16 bf16
    if bm is None:
        bm = 128 if B >= 128 else _round_up(B, sub)
    bm = _round_up(bm, sub)
    Bp = _round_up(B, bm)

    h128 = _round_up(H, 128)
    if bn is None:
        bn = 256 if h128 % 256 == 0 else 128               # 256-wide MXU tiles on v6e/v7x
    bn = _round_up(bn, 128)
    Hp = _round_up(H, bn)

    if bk is None:
        bk = min(512, _round_up(K, 128))                    # keep K tiles VMEM-friendly (v7x)
    bk = _round_up(bk, 128)
    Kp = _round_up(K, bk)

    # --- wrapper glue: fuse operands, fold biases, pad to tile multiples --------
    xh = jnp.concatenate([x, h_prev], axis=1).astype(compute_dtype)        # (B, K)
    w = jnp.concatenate([w_ih.T, w_hh.T], axis=0).astype(compute_dtype)    # (K, H)
    bias = (b_ih.astype(f32) + b_hh.astype(f32)).reshape(1, H)             # (1, H)
    tau_row = tau.astype(f32).reshape(1, H)                                # (1, H)

    def pad2(a, rows, cols, value=0.0):
        pr, pc = rows - a.shape[0], cols - a.shape[1]
        if pr == 0 and pc == 0:
            return a
        return jnp.pad(a, ((0, pr), (0, pc)), constant_values=value)

    xh_p = pad2(xh, Bp, Kp)
    w_p = pad2(w, Kp, Hp)
    b_p = pad2(bias, 1, Hp)
    tau_p = pad2(tau_row, 1, Hp, value=1.0)   # avoid 1/0 in padded lanes
    h_p = pad2(h_prev, Bp, Hp)                # native dtype; cast to f32 in-kernel

    grid = (Bp // bm, Hp // bn, Kp // bk)

    # Explicit VMEM budget: double-buffered tiles + accumulator, capped at 48 MiB (v7x).
    cb = compute_dtype.itemsize
    ob = jnp.dtype(out_dtype).itemsize
    vmem_est = (
        2 * (bm * bk + bk * bn) * cb        # double-buffered xh / W tiles
        + 2 * (bm * bn * ob + 2 * bn * 4)   # h_prev (native), bias, tau tiles
        + 2 * bm * bn * ob                  # output tile
        + bm * bn * 4                       # f32 accumulator scratch
    )
    vmem_limit = int(min(48 * 1024 * 1024, max(4 * 1024 * 1024, 2 * vmem_est)))

    out_p = pl.pallas_call(
        _ltc_kernel,
        out_shape=jax.ShapeDtypeStruct((Bp, Hp), out_dtype),
        grid_spec=pltpu.PrefetchScalarGridSpec(
            num_scalar_prefetch=0,
            grid=grid,
            in_specs=[
                pl.BlockSpec((bm, bk), lambda i, j, k: (i, k)),   # xh = [x | h_prev]
                pl.BlockSpec((bk, bn), lambda i, j, k: (k, j)),   # W  = [Wih^T ; Whh^T]
                pl.BlockSpec((1, bn), lambda i, j, k: (0, j)),    # folded bias row
                pl.BlockSpec((1, bn), lambda i, j, k: (0, j)),    # tau row
                pl.BlockSpec((bm, bn), lambda i, j, k: (i, j)),   # h_prev (native dtype)
            ],
            out_specs=pl.BlockSpec((bm, bn), lambda i, j, k: (i, j)),
            scratch_shapes=[pltpu.VMEM((bm, bn), jnp.float32)],
        ),
        compiler_params=pltpu.CompilerParams(
            dimension_semantics=("parallel", "parallel", "arbitrary"),
            vmem_limit_bytes=vmem_limit,
        ),
    )(xh_p, w_p, b_p, tau_p, h_p)

    return out_p[:B, :H]


def _reference(x, h_prev, w_ih, w_hh, b_ih, b_hh, tau, compute_dtype=jnp.float32):
    """Pure-JAX reference mirroring the PyTorch module (optionally with bf16-rounded
    matmul operands, to validate the bf16-MXU path)."""
    f32 = jnp.float32
    rnd = lambda a: a.astype(compute_dtype).astype(f32)
    pre = rnd(x) @ rnd(w_ih).T + rnd(h_prev) @ rnd(w_hh).T + b_ih + b_hh
    rnn_out = jnp.tanh(pre)
    t = jnp.abs(tau)
    return (1.0 - 1.0 / t) * h_prev.astype(f32) + (1.0 / t) * rnn_out


if __name__ == "__main__":
    # Small shapes consistent with the module: batch=2, input_size=16, hidden_size=32.
    B, I, H = 2, 16, 32
    key = jax.random.PRNGKey(0)
    kx, kh, k1, k2, k3, k4, k5 = jax.random.split(key, 7)

    x = jax.random.normal(kx, (B, I), dtype=jnp.float32)
    h_prev = jax.random.normal(kh, (B, H), dtype=jnp.float32)

    bound = 1.0 / float(H) ** 0.5   # PyTorch nn.RNNCell init bound = 1/sqrt(hidden)
    w_ih = jax.random.uniform(k1, (H, I), minval=-bound, maxval=bound, dtype=jnp.float32)
    w_hh = jax.random.uniform(k2, (H, H), minval=-bound, maxval=bound, dtype=jnp.float32)
    b_ih = jax.random.uniform(k3, (H,), minval=-bound, maxval=bound, dtype=jnp.float32)
    b_hh = jax.random.uniform(k4, (H,), minval=-bound, maxval=bound, dtype=jnp.float32)
    tau = jax.random.uniform(k5, (H,), minval=0.1, maxval=1.0, dtype=jnp.float32)

    ltc = jax.jit(
        liquid_time_constant_forward,
        static_argnames=("compute_dtype", "bm", "bn", "bk"),
    )

    # 1) f32 path at module shapes (grid collapses to a single padded tile).
    h = jax.block_until_ready(ltc(x, h_prev, w_ih, w_hh, b_ih, b_hh, tau))
    ref = _reference(x, h_prev, w_ih, w_hh, b_ih, b_hh, tau)
    assert h.shape == (B, H) and h.dtype == h_prev.dtype
    assert jnp.allclose(h, ref, atol=1e-4, rtol=1e-4), "f32 LTC mismatch vs reference"

    # 2) bf16 MXU path (f32 accumulation + f32 state blend, f32 hidden state out).
    h_bf16 = jax.block_until_ready(
        ltc(x, h_prev, w_ih, w_hh, b_ih, b_hh, tau, compute_dtype=jnp.bfloat16)
    )
    ref_bf16 = _reference(
        x, h_prev, w_ih, w_hh, b_ih, b_hh, tau, compute_dtype=jnp.bfloat16
    )
    assert jnp.allclose(h_bf16, ref_bf16, atol=2e-3, rtol=2e-3), "bf16 LTC mismatch"

    # 3) Multi-tile exercise: bigger batched call with forced small tiles so the
    #    (M, N, K) grid is (2, 2, 2) and the K accumulator / pl.when paths loop.
    B2, I2, H2 = 16, 64, 192
    k6, k7, k8, k9, k10, k11, k12 = jax.random.split(jax.random.PRNGKey(1), 7)
    bound2 = 1.0 / float(H2) ** 0.5
    x2 = jax.random.normal(k6, (B2, I2), dtype=jnp.float32)
    h2 = jax.random.normal(k7, (B2, H2), dtype=jnp.float32)
    w_ih2 = jax.random.uniform(k8, (H2, I2), minval=-bound2, maxval=bound2, dtype=jnp.float32)
    w_hh2 = jax.random.uniform(k9, (H2, H2), minval=-bound2, maxval=bound2, dtype=jnp.float32)
    b_ih2 = jax.random.uniform(k10, (H2,), minval=-bound2, maxval=bound2, dtype=jnp.float32)
    b_hh2 = jax.random.uniform(k11, (H2,), minval=-bound2, maxval=bound2, dtype=jnp.float32)
    tau2 = jax.random.uniform(k12, (H2,), minval=0.1, maxval=1.0, dtype=jnp.float32)

    ltc_small_tiles = jax.jit(
        functools.partial(liquid_time_constant_forward, bm=8, bn=128, bk=128)
    )
    h_big = jax.block_until_ready(
        ltc_small_tiles(x2, h2, w_ih2, w_hh2, b_ih2, b_hh2, tau2)
    )
    ref_big = _reference(x2, h2, w_ih2, w_hh2, b_ih2, b_hh2, tau2)
    assert jnp.allclose(h_big, ref_big, atol=1e-4, rtol=1e-4), "gridded LTC mismatch"

    print("KERNEL_OK")
</pallas_src>

<mosaic_0001>
module attributes {stable_mosaic.version = 11 : i64} {
  func.func @_ltc_kernel(%arg0: i32, %arg1: i32, %arg2: i32, %arg3: memref<8x128xf32, #tpu.memory_space<vmem>>, %arg4: memref<128x128xf32, #tpu.memory_space<vmem>>, %arg5: memref<1x128xf32, #tpu.memory_space<vmem>>, %arg6: memref<1x128xf32, #tpu.memory_space<vmem>>, %arg7: memref<8x128xf32, #tpu.memory_space<vmem>>, %arg8: memref<8x128xf32, #tpu.memory_space<vmem>>, %arg9: memref<8x128xf32, #tpu.memory_space<vmem>>) attributes {dimension_semantics = [#tpu.dimension_semantics<parallel>, #tpu.dimension_semantics<parallel>, #tpu.dimension_semantics<arbitrary>], iteration_bounds = array<i64: 1, 1, 1>, scalar_prefetch = 0 : i64, scratch_operands = 1 : i64, tpu.core_type = #tpu.core_type<tc>, window_params = [{transform_indices = @transform_0, window_bounds = array<i64: 8, 128>}, {transform_indices = @transform_1, window_bounds = array<i64: 128, 128>}, {transform_indices = @transform_2, window_bounds = array<i64: 1, 128>}, {transform_indices = @transform_3, window_bounds = array<i64: 1, 128>}, {transform_indices = @transform_4, window_bounds = array<i64: 8, 128>}, {transform_indices = @transform_5, window_bounds = array<i64: 8, 128>}]} {
    %c0_i32 = arith.constant 0 : i32
    %0 = arith.cmpi eq, %arg2, %c0_i32 : i32
    %1 = arith.extui %0 : i1 to i32
    %c0_i32_0 = arith.constant 0 : i32
    %2 = arith.cmpi ne, %1, %c0_i32_0 : i32
    scf.if %2 {
      %cst_10 = arith.constant 0.000000e+00 : f32
      %12 = vector.broadcast %cst_10 : f32 to vector<8x128xf32>
      %c0_11 = arith.constant 0 : index
      %c0_12 = arith.constant 0 : index
      %13 = vector.load %arg9[%c0_11, %c0_12] : memref<8x128xf32, #tpu.memory_space<vmem>>, vector<8x128xf32>
      tpu.vector_store %arg9[%c0_11, %c0_12], %12 {strides = array<i32>} : memref<8x128xf32, #tpu.memory_space<vmem>>, vector<8x128xf32>,
    } else {
    }
    %c0 = arith.constant 0 : index
    %c0_1 = arith.constant 0 : index
    %3 = vector.load %arg9[%c0, %c0_1] : memref<8x128xf32, #tpu.memory_space<vmem>>, vector<8x128xf32>
    %c0_2 = arith.constant 0 : index
    %c0_3 = arith.constant 0 : index
    %4 = vector.load %arg3[%c0_2, %c0_3] : memref<8x128xf32, #tpu.memory_space<vmem>>, vector<8x128xf32>
    %c0_4 = arith.constant 0 : index
    %c0_5 = arith.constant 0 : index
    %5 = vector.load %arg4[%c0_4, %c0_5] : memref<128x128xf32, #tpu.memory_space<vmem>>, vector<128x128xf32>
    %cst = arith.constant dense<0.000000e+00> : vector<8x128xf32>
    %6 = tpu.matmul %4, %5, %cst {dimension_numbers = #tpu.dot_dimension_numbers<[1], [0], [0], [1], [0, 0, 1, 1], [], []>} : vector<8x128xf32>, vector<128x128xf32>, vector<8x128xf32> -> vector<8x128xf32>
    %7 = arith.addf %3, %6 : vector<8x128xf32>
    %c0_6 = arith.constant 0 : index
    %c0_7 = arith.constant 0 : index
    %8 = vector.load %arg9[%c0_6, %c0_7] : memref<8x128xf32, #tpu.memory_space<vmem>>, vector<8x128xf32>
    tpu.vector_store %arg9[%c0_6, %c0_7], %7 {strides = array<i32>} : memref<8x128xf32, #tpu.memory_space<vmem>>, vector<8x128xf32>,
    %c0_i32_8 = arith.constant 0 : i32
    %9 = arith.cmpi eq, %arg2, %c0_i32_8 : i32
    %10 = arith.extui %9 : i1 to i32
    %c0_i32_9 = arith.constant 0 : i32
    %11 = arith.cmpi ne, %10, %c0_i32_9 : i32
    scf.if %11 {
      %c0_10 = arith.constant 0 : index
      %c0_11 = arith.constant 0 : index
      %12 = vector.load %arg9[%c0_10, %c0_11] : memref<8x128xf32, #tpu.memory_space<vmem>>, vector<8x128xf32>
      %c0_12 = arith.constant 0 : index
      %c0_13 = arith.constant 0 : index
      %13 = vector.load %arg5[%c0_12, %c0_13] : memref<1x128xf32, #tpu.memory_space<vmem>>, vector<1x128xf32>
      %14 = vector.broadcast %13 : vector<1x128xf32> to vector<8x128xf32>
      %15 = arith.addf %12, %14 : vector<8x128xf32>
      %16 = math.tanh %15 : vector<8x128xf32>
      %c0_14 = arith.constant 0 : index
      %c0_15 = arith.constant 0 : index
      %17 = vector.load %arg6[%c0_14, %c0_15] : memref<1x128xf32, #tpu.memory_space<vmem>>, vector<1x128xf32>
      %18 = math.absf %17 : vector<1x128xf32>
      %19 = tpu.reciprocal %18 : vector<1x128xf32> -> vector<1x128xf32>
      %c0_16 = arith.constant 0 : index
      %c0_17 = arith.constant 0 : index
      %20 = vector.load %arg7[%c0_16, %c0_17] : memref<8x128xf32, #tpu.memory_space<vmem>>, vector<8x128xf32>
      %21 = arith.subf %16, %20 : vector<8x128xf32>
      %22 = vector.broadcast %19 : vector<1x128xf32> to vector<8x128xf32>
      %23 = arith.mulf %22, %21 : vector<8x128xf32>
      %24 = arith.addf %20, %23 : vector<8x128xf32>
      %c0_18 = arith.constant 0 : index
      %c0_19 = arith.constant 0 : index
      %25 = vector.load %arg8[%c0_18, %c0_19] : memref<8x128xf32, #tpu.memory_space<vmem>>, vector<8x128xf32>
      tpu.vector_store %arg8[%c0_18, %c0_19], %24 {strides = array<i32>} : memref<8x128xf32, #tpu.memory_space<vmem>>, vector<8x128xf32>,
    } else {
    }
    return
  }
  func.func @transform_0(%arg0: i32, %arg1: i32, %arg2: i32) -> (i32, i32) {
    %c0_i32 = arith.constant 0 : i32
    return %arg0, %arg2 : i32, i32
  }
  func.func @transform_1(%arg0: i32, %arg1: i32, %arg2: i32) -> (i32, i32) {
    %c0_i32 = arith.constant 0 : i32
    return %arg2, %arg1 : i32, i32
  }
  func.func @transform_2(%arg0: i32, %arg1: i32, %arg2: i32) -> (i32, i32) {
    %c0_i32 = arith.constant 0 : i32
    %c0_i32_0 = arith.constant 0 : i32
    return %c0_i32, %arg1 : i32, i32
  }
  func.func @transform_3(%arg0: i32, %arg1: i32, %arg2: i32) -> (i32, i32) {
    %c0_i32 = arith.constant 0 : i32
    %c0_i32_0 = arith.constant 0 : i32
    return %c0_i32, %arg1 : i32, i32
  }
  func.func @transform_4(%arg0: i32, %arg1: i32, %arg2: i32) -> (i32, i32) {
    %c0_i32 = arith.constant 0 : i32
    return %arg0, %arg1 : i32, i32
  }
  func.func @transform_5(%arg0: i32, %arg1: i32, %arg2: i32) -> (i32, i32) {
    %c0_i32 = arith.constant 0 : i32
    return %arg0, %arg1 : i32, i32
  }
}

</mosaic_0001>

<llo_original>
// kernel: liquid_time_constant_forward.1
$region0: #{liquid_time_constant_forward.1}
  #allocation0 [shape = 'u32[]', space=smem, size = 0x4, offset = 0x4, fixed_abs, tag = 'smem constant byte address 0x4 - core index']
  #allocation1 [shape = 'u32[72,128]{1,0:T(1,128)}', space=vmem, size = 0x9000, scoped, tag = 'internal scratch']
  #allocation2 [shape = 'f32[8,128]{1,0:T(8,128)}', space=vmem, size = 0x1000, scoped, tag = 'scratch operand']
  %s0 = inlined_call_operand.vmem [shape: f32[8,128], index: 0, kind: input, shape index: {}]
  %s1 = inlined_call_operand.vmem [shape: f32[128,128], index: 1, kind: input, shape index: {}]
  %s2 = inlined_call_operand.vmem [shape: f32[1,128], index: 2, kind: input, shape index: {}]
  %s3 = inlined_call_operand.vmem [shape: f32[1,128], index: 3, kind: input, shape index: {}]
  %s4 = inlined_call_operand.vmem [shape: f32[8,128], index: 4, kind: input, shape index: {}]
  %s5 = inlined_call_operand.vmem [shape: f32[8,128], index: 5, kind: output, shape index: {}]
  %s6 = sld [smem:[#allocation0]]
  $region38: #{liquid_time_constant_forward.1} parent=0
    _
  %s8 = ssub.s32 1, %s6
  %s9 = scalar_select 0, %s8, %s6
  // Predicated region
  $region2: #{liquid_time_constant_forward.1} parent=0 // pred_check
    _
  $region3: #{liquid_time_constant_forward.1} parent=0 // pred_check_branch
    %11 = sbr.rel (0) target = $region5
  $region4: #{liquid_time_constant_forward.1} parent=0 // pred_region
    _
  $region5: #{liquid_time_constant_forward.1} parent=0 // pred_fallthru
    _
  // Predicated region
  $region6: #{liquid_time_constant_forward.1} parent=0 // pred_check
    _
  $region7: #{liquid_time_constant_forward.1} parent=0 // pred_check_branch
    %13 = sbr.rel (0) target = $region9
  $region8: #{liquid_time_constant_forward.1} parent=0 // pred_region
    _
  $region9: #{liquid_time_constant_forward.1} parent=0 // pred_fallthru
    _
  // Predicated region
  $region10: #{liquid_time_constant_forward.1} parent=0 // pred_check
    _
  $region11: #{liquid_time_constant_forward.1} parent=0 // pred_check_branch
    %15 = sbr.rel (0) target = $region13
  $region12: #{liquid_time_constant_forward.1} parent=0 // pred_region
    _
  $region13: #{liquid_time_constant_forward.1} parent=0 // pred_fallthru
    _
  // Predicated region
  $region14: #{liquid_time_constant_forward.1} parent=0 // pred_check
    _
  $region15: #{liquid_time_constant_forward.1} parent=0 // pred_check_branch
    %17 = sbr.rel (0) target = $region17
  $region16: #{liquid_time_constant_forward.1} parent=0 // pred_region
    _
  $region17: #{liquid_time_constant_forward.1} parent=0 // pred_fallthru
    _
  // Predicated region
  $region18: #{liquid_time_constant_forward.1} parent=0 // pred_check
    _
  $region19: #{liquid_time_constant_forward.1} parent=0 // pred_check_branch
    %19 = sbr.rel (0) target = $region21
  $region20: #{liquid_time_constant_forward.1} parent=0 // pred_region
    _
  $region21: #{liquid_time_constant_forward.1} parent=0 // pred_fallthru
    _
  %p20 = scmp.eq.s32.totalorder 0, 0
  // Predicated region
  $region22: #{liquid_time_constant_forward.1} parent=0 // pred_check
    %p21 = pneg %p20
  $region23: #{liquid_time_constant_forward.1} parent=0 // pred_check_branch
    %23 = sbr.rel (%p21) target = $region25
  $region24: #{liquid_time_constant_forward.1} parent=0 // pred_region
    %24 = vst [vmem:[#allocation2] sm:$0xff] 0.0
  $region25: #{liquid_time_constant_forward.1} parent=0 // pred_fallthru
    _
  %v25 = vld [vmem:[#allocation2] sm:$0xff]
  %v26 = vld [vmem:[%s0] sm:$0xff]
  %v27 = vld [vmem:[%s1] sm:$0xff]
  %v28 = vld [vmem:[%s1 + $0x8] sm:$0xff]
  %v29 = vld [vmem:[%s1 + $0x10] sm:$0xff]
  %v30 = vld [vmem:[%s1 + $0x18] sm:$0xff]
  %v31 = vld [vmem:[%s1 + $0x20] sm:$0xff]
  %v32 = vld [vmem:[%s1 + $0x28] sm:$0xff]
  %v33 = vld [vmem:[%s1 + $0x30] sm:$0xff]
  %v34 = vld [vmem:[%s1 + $0x38] sm:$0xff]
  %v35 = vld [vmem:[%s1 + $0x40] sm:$0xff]
  %v36 = vld [vmem:[%s1 + $0x48] sm:$0xff]
  %v37 = vld [vmem:[%s1 + $0x50] sm:$0xff]
  %v38 = vld [vmem:[%s1 + $0x58] sm:$0xff]
  %v39 = vld [vmem:[%s1 + $0x60] sm:$0xff]
  %v40 = vld [vmem:[%s1 + $0x68] sm:$0xff]
  %v41 = vld [vmem:[%s1 + $0x70] sm:$0xff]
  %v42 = vld [vmem:[%s1 + $0x78] sm:$0xff]
  %43 = vmatpush.msra.mxu0 %v42
  %44 = vmatpush.msra.mxu0 %v41
  %45 = vmatpush.msra.mxu0 %v40
  %46 = vmatpush.msra.mxu0 %v39
  %47 = vmatpush.msra.mxu0 %v38
  %48 = vmatpush.msra.mxu0 %v37
  %49 = vmatpush.msra.mxu0 %v36
  %50 = vmatpush.msra.mxu0 %v35
  %51 = vmatpush.msra.mxu0 %v34
  %52 = vmatpush.msra.mxu0 %v33
  %53 = vmatpush.msra.mxu0 %v32
  %54 = vmatpush.msra.mxu0 %v31
  %55 = vmatpush.msra.mxu0 %v30
  %56 = vmatpush.msra.mxu0 %v29
  %57 = vmatpush.msra.mxu0 %v28
  %58 = vmatpush.msra.mxu0 %v27
  %59 = vmatmul.f32.gmra.mxu0 %v26
  %v60 = vpop.f32.mrf.mxu0
  %v61 = vadd.f32 0.0, %v60
  %62 = vdwg.mxu0
  %v63 = vadd.f32 %v25, %v61
  %64 = vst [vmem:[#allocation2] sm:$0xff] %v63
  // Predicated region
  $region26: #{liquid_time_constant_forward.1} parent=0 // pred_check
    %p65 = pneg %p20
  $region27: #{liquid_time_constant_forward.1} parent=0 // pred_check_branch
    %67 = sbr.rel (%p65) target = $region29
  $region28: #{liquid_time_constant_forward.1} parent=0 // pred_region
    %v68 = vld [vmem:[#allocation2] sm:$0xff]
    %v69 = vld [vmem:[%s2] sm:$0x1]
    %v71 = vperm.slane %v69, 0
    %v73 = vadd.f32 %v68, %v71
    %v74 = vtanh.pop %v73
    %v75 = vld [vmem:[%s3] sm:$0x1]
    %v76 = vand.u32 2147483647, %v75
    %v77 = vrcp.pop %v76
    %v78 = vmul.f32 %v76, %v77
    %v79 = vsub.f32 1.0, %v78
    %v80 = vmul.f32 %v77, %v79
    %v81 = vadd.f32 %v77, %v80
    %vm82 = vweird.f32 %v76
    %vm83 = vweird.f32 %v77
    %vm84 = vmor %vm82, %vm83
    %v85 = vsel %vm84, %v77, %v81
    %v86 = vand.u32 2147483647, %v76
    %vm87 = vcmp.eq.f32.partialorder %v86, 8.507059e+37
    %v88 = vand.u32 %v76, 2147483648
    %v89 = vor.u32 1.1754944e-38, %v88
    %v90 = vsel %vm87, %v89, %v85
    %v91 = vld [vmem:[%s4] sm:$0xff]
    %v92 = vsub.f32 %v74, %v91
    %v94 = vperm.slane %v90, 0
    %v96 = vmul.f32 %v94, %v92
    %v97 = vadd.f32 %v91, %v96
    %98 = vst [vmem:[%s5] sm:$0xff] %v97
  $region29: #{liquid_time_constant_forward.1} parent=0 // pred_fallthru
    _
  // Predicated region
  $region30: #{liquid_time_constant_forward.1} parent=0 // pred_check
    _
  $region31: #{liquid_time_constant_forward.1} parent=0 // pred_check_branch
    %100 = sbr.rel (0) target = $region33
  $region32: #{liquid_time_constant_forward.1} parent=0 // pred_region
    _
  $region33: #{liquid_time_constant_forward.1} parent=0 // pred_fallthru
    _
  // Predicated region
  $region34: #{liquid_time_constant_forward.1} parent=0 // pred_check
    _
  $region35: #{liquid_time_constant_forward.1} parent=0 // pred_check_branch
    %102 = sbr.rel (0) target = $region37
  $region36: #{liquid_time_constant_forward.1} parent=0 // pred_region
    _
  $region37: #{liquid_time_constant_forward.1} parent=0 // pred_fallthru
    _

</llo_original>
